<compile_context>
chip_gen: v7x
topology: tpu7x:2x2x1
jax: 0.10.0
libtpu: 0.0.40
codegen_flags: <defaults>
</compile_context>

<pallas_src>
import functools

import jax
import jax.numpy as jnp
from jax.experimental import pallas as pl
from jax.experimental.pallas import tpu as pltpu


# ---------------------------------------------------------------------------
# Kernels
# ---------------------------------------------------------------------------
def _db_kernel_fullc(tgt_ref, x_ref, aux_ref, o_ref, *, tb, B,
                     p_peak, p_drop, alpha):
    """Full-channel path (the whole channel dim lives in one block).

    tgt_ref : SMEM (B,) int32 scalar-prefetch -- target class per batch item.
    x_ref   : (tb, C, HWp) activations.
    aux_ref : (tb, 2, HWp) f32 -- [rand_peak, rand_patch(nearest-upsampled)].
    o_ref   : (tb, C, HWp) output.
    """
    bi = pl.program_id(0)
    dtype = x_ref.dtype
    scale = 1.0 - alpha
    for i in range(tb):                            # tb <= 8, unrolled
        b = jnp.minimum(bi * tb + i, B - 1)        # clamp for ragged last batch tile
        c = tgt_ref[b]                             # target channel (SMEM scalar)
        mcls = x_ref[i, pl.ds(c, 1), :]            # (1, HWp) target-class channel
        rpeak = aux_ref[i, 0:1, :]
        rpatch = aux_ref[i, 1:2, :]
        m = jnp.max(mcls, axis=-1, keepdims=True)  # spatial max of the channel
        peak = ((mcls == m) & (rpeak <= p_peak)).astype(jnp.float32)
        patch = (1.0 - peak) * (rpatch <= p_drop).astype(jnp.float32)
        # peak * patch == 0 by construction, so
        #   (1 - s*peak) * (1 - s*patch) == 1 - s*(peak + patch)
        factor = (1.0 - scale * (peak + patch)).astype(dtype)   # (1, HWp)
        o_ref[i] = x_ref[i] * factor


def _db_kernel_tiled(x_ref, aux_ref, o_ref, factor_ref, *, p_peak, p_drop, alpha):
    """Channel-tiled path: factor computed once per batch tile and cached.

    x_ref      : (tb, tc, HWp) activations.
    aux_ref    : (tb, 3, HWp) f32 -- [mcls, rand_peak, rand_patch]; block index
                 is constant across ci so it stays resident (no re-DMA).
    factor_ref : (tb, 1, HWp) f32 VMEM scratch (persists across grid steps).
    """
    ci = pl.program_id(1)

    @pl.when(ci == 0)
    def _():
        mcls = aux_ref[:, 0:1, :]
        rpeak = aux_ref[:, 1:2, :]
        rpatch = aux_ref[:, 2:3, :]
        m = jnp.max(mcls, axis=-1, keepdims=True)
        peak = ((mcls == m) & (rpeak <= p_peak)).astype(jnp.float32)
        patch = (1.0 - peak) * (rpatch <= p_drop).astype(jnp.float32)
        factor_ref[...] = 1.0 - (1.0 - alpha) * (peak + patch)

    o_ref[...] = x_ref[...] * factor_ref[...].astype(o_ref.dtype)


# ---------------------------------------------------------------------------
# Wrapper
# ---------------------------------------------------------------------------
def _tpu_sizing():
    """Generation-aware block target & VMEM cap (v5e/v6e: 128 MiB, v7x: 64 MiB)."""
    try:
        vmem_cap = int(pltpu.get_tpu_info().vmem_capacity_bytes)
    except Exception:
        vmem_cap = 64 * 1024 * 1024                 # conservative (v7x-like)
    if vmem_cap >= 96 * 1024 * 1024:                # v5e / v6e: big blocks are free
        return 6 * 1024 * 1024, 96 * 1024 * 1024
    return 2 * 1024 * 1024, 48 * 1024 * 1024        # v7x: smaller blocks, <=48 MiB cap


def db_layer(x, targets, rand_peak, rand_patch_coarse, *,
             p_peak=0.5, p_drop=0.25, patch_g=2, alpha=0.1,
             target_block_bytes=None):
    B, C, H, W = x.shape
    HW = H * W
    dtype = x.dtype
    itemsize = jnp.dtype(dtype).itemsize

    auto_block, vmem_cap_limit = _tpu_sizing()
    if target_block_bytes is None:
        target_block_bytes = auto_block

    # ---- layout glue (masking math stays in the kernel) --------------------
    # Lane-dense spatial dim, padded to a multiple of 128 so stores are full
    # unmasked `vst` (biggest single layout lever for this mem-bound kernel).
    HWp = max(128, ((HW + 127) // 128) * 128)
    x3 = x.reshape(B, C, HW)

    # nearest upsample of the coarse patch grid (matches F.interpolate 'nearest')
    hs = (jnp.arange(H) * (H // patch_g)) // H
    ws = (jnp.arange(W) * (W // patch_g)) // W
    rpatch = rand_patch_coarse[:, hs][:, :, ws].reshape(B, HW).astype(jnp.float32)
    rpeak = rand_peak.reshape(B, HW).astype(jnp.float32)

    if HWp != HW:
        padv = jnp.finfo(dtype).min if jnp.issubdtype(dtype, jnp.floating) else -(2 ** 30)
        x3 = jnp.pad(x3, ((0, 0), (0, 0), (0, HWp - HW)), constant_values=padv)
        rpeak = jnp.pad(rpeak, ((0, 0), (0, HWp - HW)), constant_values=2.0)
        rpatch = jnp.pad(rpatch, ((0, 0), (0, HWp - HW)), constant_values=2.0)

    # NOTE: PyTorch would raise on out-of-range targets; we clamp instead.
    tgt = jnp.clip(targets.astype(jnp.int32), 0, C - 1)

    # ---- tile selection -----------------------------------------------------
    sub = {4: 8, 2: 16, 1: 32}.get(itemsize, 8)      # dtype-aware sublane packing
    row_bytes = HWp * itemsize
    full_c = (C * row_bytes <= target_block_bytes) or (C <= sub)

    if full_c:
        tc = C
    else:
        tc = max(sub, min(C, target_block_bytes // row_bytes) // sub * sub)
        divisors = [t for t in range(sub, tc + 1, sub) if C % t == 0]
        if divisors:
            tc = divisors[-1]                        # avoid ragged last channel tile

    tb = int(min(B, max(1, target_block_bytes // (tc * row_bytes))))
    if full_c:
        tb = min(tb, 8)                              # bounds the unrolled per-row loop

    # v7x has 2 TensorCores: give the "parallel" batch axis >= 2 blocks whenever
    # the problem is bigger than one block (near-free extra step on v5e/v6e).
    total_bytes = B * C * HWp * itemsize
    if B >= 2 and pl.cdiv(B, tb) < 2 and (not full_c or total_bytes > (1 << 20)):
        tb = (B + 1) // 2

    nb = pl.cdiv(B, tb)
    x_block = tb * tc * HWp * itemsize

    if full_c:
        # -------- full-channel path: scalar-prefetched target index ---------
        aux = jnp.stack([rpeak, rpatch], axis=1)                 # (B, 2, HWp) f32
        aux_block = tb * 2 * HWp * 4
        need = 2 * (2 * x_block + aux_block)                     # dbl-buffered in+out+aux
        vmem_limit = int(min(vmem_cap_limit, max(16 << 20, need + (8 << 20))))

        kernel = functools.partial(_db_kernel_fullc, tb=tb, B=B,
                                   p_peak=p_peak, p_drop=p_drop, alpha=alpha)
        out3 = pl.pallas_call(
            kernel,
            out_shape=jax.ShapeDtypeStruct((B, C, HWp), dtype),
            grid_spec=pltpu.PrefetchScalarGridSpec(
                num_scalar_prefetch=1,
                grid=(nb,),
                in_specs=[
                    pl.BlockSpec((tb, C, HWp), lambda bi, _: (bi, 0, 0)),
                    pl.BlockSpec((tb, 2, HWp), lambda bi, _: (bi, 0, 0)),
                ],
                out_specs=pl.BlockSpec((tb, C, HWp), lambda bi, _: (bi, 0, 0)),
            ),
            compiler_params=pltpu.CompilerParams(
                dimension_semantics=("parallel",),
                vmem_limit_bytes=vmem_limit,
            ),
            cost_estimate=pl.CostEstimate(
                flops=int(2 * B * C * HWp + 10 * B * HWp),
                transcendentals=0,
                bytes_accessed=int(2 * B * C * HWp * itemsize + 2 * B * HWp * 4),
            ),
        )(tgt, x3, aux)
    else:
        # -------- channel-tiled path: cached factor across channel tiles ----
        # Cheap wrapper gather of the target channel (B*HWp elements) carried
        # with the randoms as one stacked aux stream (fewer DMA descriptors).
        mcls = jnp.take_along_axis(x3, tgt[:, None, None], axis=1)[:, 0, :]
        aux = jnp.stack([mcls.astype(jnp.float32), rpeak, rpatch], axis=1)  # (B,3,HWp)
        nc = pl.cdiv(C, tc)
        aux_block = tb * 3 * HWp * 4
        scratch_bytes = tb * HWp * 4
        need = 2 * (2 * x_block + aux_block) + scratch_bytes
        vmem_limit = int(min(vmem_cap_limit, max(16 << 20, need + (8 << 20))))

        kernel = functools.partial(_db_kernel_tiled,
                                   p_peak=p_peak, p_drop=p_drop, alpha=alpha)
        out3 = pl.pallas_call(
            kernel,
            out_shape=jax.ShapeDtypeStruct((B, C, HWp), dtype),
            grid=(nb, nc),
            in_specs=[
                pl.BlockSpec((tb, tc, HWp), lambda bi, ci: (bi, ci, 0)),
                pl.BlockSpec((tb, 3, HWp), lambda bi, ci: (bi, 0, 0)),
            ],
            out_specs=pl.BlockSpec((tb, tc, HWp), lambda bi, ci: (bi, ci, 0)),
            scratch_shapes=[pltpu.VMEM((tb, 1, HWp), jnp.float32)],
            compiler_params=pltpu.CompilerParams(
                dimension_semantics=("parallel", "arbitrary"),
                vmem_limit_bytes=vmem_limit,
            ),
            cost_estimate=pl.CostEstimate(
                flops=int(2 * B * C * HWp + 10 * B * HWp),
                transcendentals=0,
                bytes_accessed=int(2 * B * C * HWp * itemsize + 3 * B * HWp * 4),
            ),
        )(x3, aux)

    if HWp != HW:
        out3 = out3[:, :, :HW]
    return out3.reshape(B, C, H, W)


# ---------------------------------------------------------------------------
# Pure-JAX reference mirroring the PyTorch forward (same random inputs).
# ---------------------------------------------------------------------------
def db_layer_ref(x, targets, rand_peak, rand_patch_coarse, *,
                 p_peak=0.5, p_drop=0.25, patch_g=2, alpha=0.1):
    B, C, H, W = x.shape
    hs = (jnp.arange(H) * (H // patch_g)) // H
    ws = (jnp.arange(W) * (W // patch_g)) // W
    out = []
    for nB in range(B):
        xb = x[nB]
        mask_cls = xb[targets[nB]]
        peak = (mask_cls == mask_cls.max()).astype(x.dtype)
        peak = peak * (rand_peak[nB] <= p_peak).astype(x.dtype)
        x1 = xb - (1.0 - alpha) * xb * peak[None]
        rp = rand_patch_coarse[nB][hs][:, ws]
        patch = (1.0 - peak) * (rp <= p_drop).astype(x.dtype)
        x2 = x1 - (1.0 - alpha) * x1 * patch[None]
        out.append(x2)
    return jnp.stack(out)


if __name__ == "__main__":
    p_peak, p_drop, patch_g, alpha = 0.5, 0.25, 2, 0.1

    # Case 1: module-spec shapes (exercises the full-channel / scalar-prefetch path).
    B, C, H, W = 2, 4, 16, 16
    k = jax.random.split(jax.random.PRNGKey(0), 4)
    x = jax.random.normal(k[0], (B, C, H, W), dtype=jnp.float32)
    targets = jax.random.randint(k[1], (B,), 0, C, dtype=jnp.int32)
    rand_peak = jax.random.uniform(k[2], (B, H, W), dtype=jnp.float32)
    rand_patch = jax.random.uniform(k[3], (B, H // patch_g, W // patch_g),
                                    dtype=jnp.float32)

    out = jax.block_until_ready(
        db_layer(x, targets, rand_peak, rand_patch,
                 p_peak=p_peak, p_drop=p_drop, patch_g=patch_g, alpha=alpha))
    ref = db_layer_ref(x, targets, rand_peak, rand_patch,
                       p_peak=p_peak, p_drop=p_drop, patch_g=patch_g, alpha=alpha)
    assert out.shape == x.shape and out.dtype == x.dtype
    assert jnp.allclose(out, ref, atol=1e-5, rtol=1e-5)

    # Case 2: force the channel-tiled (tc < C) path with a tiny block budget.
    B2, C2 = 2, 16
    k2 = jax.random.split(jax.random.PRNGKey(1), 4)
    x2 = jax.random.normal(k2[0], (B2, C2, H, W), dtype=jnp.float32)
    t2 = jax.random.randint(k2[1], (B2,), 0, C2, dtype=jnp.int32)
    rp2 = jax.random.uniform(k2[2], (B2, H, W), dtype=jnp.float32)
    rg2 = jax.random.uniform(k2[3], (B2, H // patch_g, W // patch_g),
                             dtype=jnp.float32)
    out2 = jax.block_until_ready(
        db_layer(x2, t2, rp2, rg2, p_peak=p_peak, p_drop=p_drop,
                 patch_g=patch_g, alpha=alpha, target_block_bytes=8 * 1024))
    ref2 = db_layer_ref(x2, t2, rp2, rg2, p_peak=p_peak, p_drop=p_drop,
                        patch_g=patch_g, alpha=alpha)
    assert jnp.allclose(out2, ref2, atol=1e-5, rtol=1e-5)

    print("KERNEL_OK")
</pallas_src>

<mosaic_0001>
module attributes {stable_mosaic.version = 11 : i64} {
  func.func @_db_kernel_fullc(%arg0: i32, %arg1: memref<2xi32, #tpu.memory_space<smem>>, %arg2: memref<2x4x256xf32, #tpu.memory_space<vmem>>, %arg3: memref<2x2x256xf32, #tpu.memory_space<vmem>>, %arg4: memref<2x4x256xf32, #tpu.memory_space<vmem>>) attributes {dimension_semantics = [#tpu.dimension_semantics<parallel>], iteration_bounds = array<i64: 1>, scalar_prefetch = 1 : i64, scratch_operands = 0 : i64, tpu.core_type = #tpu.core_type<tc>, window_params = [{transform_indices = @transform_0, window_bounds = array<i64: 2, 4, 256>}, {transform_indices = @transform_1, window_bounds = array<i64: 2, 2, 256>}, {transform_indices = @transform_2, window_bounds = array<i64: 2, 4, 256>}]} {
    %c2_i32 = arith.constant 2 : i32
    %0 = arith.muli %arg0, %c2_i32 : i32
    %c0_i32 = arith.constant 0 : i32
    %1 = arith.addi %0, %c0_i32 : i32
    %c1_i32 = arith.constant 1 : i32
    %2 = arith.minsi %1, %c1_i32 : i32
    %3 = arith.index_cast %2 : i32 to index
    %4 = memref.load %arg1[%3] : memref<2xi32, #tpu.memory_space<smem>>
    %c0 = arith.constant 0 : index
    %5 = arith.index_cast %4 : i32 to index
    %c0_0 = arith.constant 0 : index
    %6 = vector.load %arg2[%c0, %5, %c0_0] : memref<2x4x256xf32, #tpu.memory_space<vmem>>, vector<1x1x256xf32>
    %7 = vector.shape_cast %6 : vector<1x1x256xf32> to vector<1x256xf32>
    %c0_1 = arith.constant 0 : index
    %c0_2 = arith.constant 0 : index
    %c0_3 = arith.constant 0 : index
    %8 = vector.load %arg3[%c0_1, %c0_2, %c0_3] : memref<2x2x256xf32, #tpu.memory_space<vmem>>, vector<1x1x256xf32>
    %9 = vector.shape_cast %8 : vector<1x1x256xf32> to vector<1x256xf32>
    %c0_4 = arith.constant 0 : index
    %c1 = arith.constant 1 : index
    %c0_5 = arith.constant 0 : index
    %10 = vector.load %arg3[%c0_4, %c1, %c0_5] : memref<2x2x256xf32, #tpu.memory_space<vmem>>, vector<1x1x256xf32>
    %11 = vector.shape_cast %10 : vector<1x1x256xf32> to vector<1x256xf32>
    %cst = arith.constant dense<0xFF800000> : vector<1xf32>
    %12 = vector.multi_reduction <maximumf>, %7, %cst [1] : vector<1x256xf32> to vector<1xf32>
    %13 = vector.shape_cast %12 : vector<1xf32> to vector<1x1xf32>
    %14 = vector.broadcast %13 : vector<1x1xf32> to vector<1x256xf32>
    %15 = arith.cmpf oeq, %7, %14 : vector<1x256xf32>
    %cst_6 = arith.constant 5.000000e-01 : f32
    %16 = vector.broadcast %cst_6 : f32 to vector<1x256xf32>
    %17 = arith.cmpf ole, %9, %16 : vector<1x256xf32>
    %18 = arith.andi %15, %17 : vector<1x256xi1>
    %19 = arith.extui %18 : vector<1x256xi1> to vector<1x256xi32>
    %20 = arith.sitofp %19 : vector<1x256xi32> to vector<1x256xf32>
    %cst_7 = arith.constant 1.000000e+00 : f32
    %21 = vector.broadcast %cst_7 : f32 to vector<1x256xf32>
    %22 = arith.subf %21, %20 : vector<1x256xf32>
    %cst_8 = arith.constant 2.500000e-01 : f32
    %23 = vector.broadcast %cst_8 : f32 to vector<1x256xf32>
    %24 = arith.cmpf ole, %11, %23 : vector<1x256xf32>
    %25 = arith.extui %24 : vector<1x256xi1> to vector<1x256xi32>
    %26 = arith.sitofp %25 : vector<1x256xi32> to vector<1x256xf32>
    %27 = arith.mulf %22, %26 : vector<1x256xf32>
    %28 = arith.addf %20, %27 : vector<1x256xf32>
    %cst_9 = arith.constant 0.899999976 : f32
    %29 = vector.broadcast %cst_9 : f32 to vector<1x256xf32>
    %30 = arith.mulf %29, %28 : vector<1x256xf32>
    %cst_10 = arith.constant 1.000000e+00 : f32
    %31 = vector.broadcast %cst_10 : f32 to vector<1x256xf32>
    %32 = arith.subf %31, %30 : vector<1x256xf32>
    %c0_11 = arith.constant 0 : index
    %c0_12 = arith.constant 0 : index
    %c0_13 = arith.constant 0 : index
    %33 = vector.load %arg2[%c0_11, %c0_12, %c0_13] : memref<2x4x256xf32, #tpu.memory_space<vmem>>, vector<1x4x256xf32>
    %34 = vector.shape_cast %33 : vector<1x4x256xf32> to vector<4x256xf32>
    %35 = vector.broadcast %32 : vector<1x256xf32> to vector<4x256xf32>
    %36 = arith.mulf %34, %35 : vector<4x256xf32>
    %c0_14 = arith.constant 0 : index
    %c0_15 = arith.constant 0 : index
    %c0_16 = arith.constant 0 : index
    %37 = vector.load %arg4[%c0_14, %c0_15, %c0_16] : memref<2x4x256xf32, #tpu.memory_space<vmem>>, vector<1x4x256xf32>
    %38 = vector.shape_cast %37 : vector<1x4x256xf32> to vector<4x256xf32>
    %39 = vector.shape_cast %36 : vector<4x256xf32> to vector<1x4x256xf32>
    tpu.vector_store %arg4[%c0_14, %c0_15, %c0_16], %39 {strides = array<i32>} : memref<2x4x256xf32, #tpu.memory_space<vmem>>, vector<1x4x256xf32>,
    %c2_i32_17 = arith.constant 2 : i32
    %40 = arith.muli %arg0, %c2_i32_17 : i32
    %c1_i32_18 = arith.constant 1 : i32
    %41 = arith.addi %40, %c1_i32_18 : i32
    %c1_i32_19 = arith.constant 1 : i32
    %42 = arith.minsi %41, %c1_i32_19 : i32
    %43 = arith.index_cast %42 : i32 to index
    %44 = memref.load %arg1[%43] : memref<2xi32, #tpu.memory_space<smem>>
    %c1_20 = arith.constant 1 : index
    %45 = arith.index_cast %44 : i32 to index
    %c0_21 = arith.constant 0 : index
    %46 = vector.load %arg2[%c1_20, %45, %c0_21] : memref<2x4x256xf32, #tpu.memory_space<vmem>>, vector<1x1x256xf32>
    %47 = vector.shape_cast %46 : vector<1x1x256xf32> to vector<1x256xf32>
    %c1_22 = arith.constant 1 : index
    %c0_23 = arith.constant 0 : index
    %c0_24 = arith.constant 0 : index
    %48 = vector.load %arg3[%c1_22, %c0_23, %c0_24] : memref<2x2x256xf32, #tpu.memory_space<vmem>>, vector<1x1x256xf32>
    %49 = vector.shape_cast %48 : vector<1x1x256xf32> to vector<1x256xf32>
    %c1_25 = arith.constant 1 : index
    %c1_26 = arith.constant 1 : index
    %c0_27 = arith.constant 0 : index
    %50 = vector.load %arg3[%c1_25, %c1_26, %c0_27] : memref<2x2x256xf32, #tpu.memory_space<vmem>>, vector<1x1x256xf32>
    %51 = vector.shape_cast %50 : vector<1x1x256xf32> to vector<1x256xf32>
    %cst_28 = arith.constant dense<0xFF800000> : vector<1xf32>
    %52 = vector.multi_reduction <maximumf>, %47, %cst_28 [1] : vector<1x256xf32> to vector<1xf32>
    %53 = vector.shape_cast %52 : vector<1xf32> to vector<1x1xf32>
    %54 = vector.broadcast %53 : vector<1x1xf32> to vector<1x256xf32>
    %55 = arith.cmpf oeq, %47, %54 : vector<1x256xf32>
    %cst_29 = arith.constant 5.000000e-01 : f32
    %56 = vector.broadcast %cst_29 : f32 to vector<1x256xf32>
    %57 = arith.cmpf ole, %49, %56 : vector<1x256xf32>
    %58 = arith.andi %55, %57 : vector<1x256xi1>
    %59 = arith.extui %58 : vector<1x256xi1> to vector<1x256xi32>
    %60 = arith.sitofp %59 : vector<1x256xi32> to vector<1x256xf32>
    %cst_30 = arith.constant 1.000000e+00 : f32
    %61 = vector.broadcast %cst_30 : f32 to vector<1x256xf32>
    %62 = arith.subf %61, %60 : vector<1x256xf32>
    %cst_31 = arith.constant 2.500000e-01 : f32
    %63 = vector.broadcast %cst_31 : f32 to vector<1x256xf32>
    %64 = arith.cmpf ole, %51, %63 : vector<1x256xf32>
    %65 = arith.extui %64 : vector<1x256xi1> to vector<1x256xi32>
    %66 = arith.sitofp %65 : vector<1x256xi32> to vector<1x256xf32>
    %67 = arith.mulf %62, %66 : vector<1x256xf32>
    %68 = arith.addf %60, %67 : vector<1x256xf32>
    %cst_32 = arith.constant 0.899999976 : f32
    %69 = vector.broadcast %cst_32 : f32 to vector<1x256xf32>
    %70 = arith.mulf %69, %68 : vector<1x256xf32>
    %cst_33 = arith.constant 1.000000e+00 : f32
    %71 = vector.broadcast %cst_33 : f32 to vector<1x256xf32>
    %72 = arith.subf %71, %70 : vector<1x256xf32>
    %c1_34 = arith.constant 1 : index
    %c0_35 = arith.constant 0 : index
    %c0_36 = arith.constant 0 : index
    %73 = vector.load %arg2[%c1_34, %c0_35, %c0_36] : memref<2x4x256xf32, #tpu.memory_space<vmem>>, vector<1x4x256xf32>
    %74 = vector.shape_cast %73 : vector<1x4x256xf32> to vector<4x256xf32>
    %75 = vector.broadcast %72 : vector<1x256xf32> to vector<4x256xf32>
    %76 = arith.mulf %74, %75 : vector<4x256xf32>
    %c1_37 = arith.constant 1 : index
    %c0_38 = arith.constant 0 : index
    %c0_39 = arith.constant 0 : index
    %77 = vector.load %arg4[%c1_37, %c0_38, %c0_39] : memref<2x4x256xf32, #tpu.memory_space<vmem>>, vector<1x4x256xf32>
    %78 = vector.shape_cast %77 : vector<1x4x256xf32> to vector<4x256xf32>
    %79 = vector.shape_cast %76 : vector<4x256xf32> to vector<1x4x256xf32>
    tpu.vector_store %arg4[%c1_37, %c0_38, %c0_39], %79 {strides = array<i32>} : memref<2x4x256xf32, #tpu.memory_space<vmem>>, vector<1x4x256xf32>,
    return
  }
  func.func @transform_0(%arg0: i32, %arg1: memref<2xi32, #tpu.memory_space<smem>>) -> (i32, i32, i32) {
    %c0_i32 = arith.constant 0 : i32
    %c0_i32_0 = arith.constant 0 : i32
    %c0_i32_1 = arith.constant 0 : i32
    return %arg0, %c0_i32, %c0_i32_0 : i32, i32, i32
  }
  func.func @transform_1(%arg0: i32, %arg1: memref<2xi32, #tpu.memory_space<smem>>) -> (i32, i32, i32) {
    %c0_i32 = arith.constant 0 : i32
    %c0_i32_0 = arith.constant 0 : i32
    %c0_i32_1 = arith.constant 0 : i32
    return %arg0, %c0_i32, %c0_i32_0 : i32, i32, i32
  }
  func.func @transform_2(%arg0: i32, %arg1: memref<2xi32, #tpu.memory_space<smem>>) -> (i32, i32, i32) {
    %c0_i32 = arith.constant 0 : i32
    %c0_i32_0 = arith.constant 0 : i32
    %c0_i32_1 = arith.constant 0 : i32
    return %arg0, %c0_i32, %c0_i32_0 : i32, i32, i32
  }
}

</mosaic_0001>

<llo_original>
// kernel: tpu_custom_call.1
$region0: #{tpu_custom_call.1}
  #allocation0 [shape = 'u32[]', space=smem, size = 0x4, offset = 0x4, fixed_abs, tag = 'smem constant byte address 0x4 - core index']
  #allocation1 [shape = 'u32[144,128]{1,0:T(1,128)}', space=vmem, size = 0x12000, scoped, tag = 'internal scratch']
  #allocation2 [shape = 's32[1]{0}', space=sflag, size = 0x4, scoped, tag = 'scoped memory for tpu_custom_call.1']
  #allocation3 [shape = 'u8[512]{0}', space=smem, size = 0x200, scoped, tag = 'prefetched SMEM operand 0']
  %s0 = inlined_call_operand.hbm [shape: s32[2], index: 0, kind: input, shape index: {}]
  %s1 = inlined_call_operand.hbm [shape: f32[2,4,256], index: 1, kind: input, shape index: {}]
  %s2 = inlined_call_operand.hbm [shape: f32[2,2,256], index: 2, kind: input, shape index: {}]
  %s3 = inlined_call_operand.hbm [shape: f32[2,4,256], index: 3, kind: output, shape index: {}]
  %s4 = sld [smem:[#allocation0]]
  $region26: #{tpu_custom_call.1} parent=0
    _
  %s6 = ssub.s32 1, %s4
  %s7 = scalar_select 0, %s6, %s4
  %9 = dma.hbm_to_smem %s0, 16, [#allocation3], [#allocation2]
  %10 = dma.done [#allocation2], 16
  %11 = sfence
  $region1: #{tpu_custom_call.1} parent=0
    #allocation4 [shape = 'u8[8192]{0}', space=vmem, size = 0x2000, scoped, tag = 'input window, operand 1, single buffered']
    #allocation5 [shape = 's32[1]{0}', space=sflag, size = 0x4, scoped, tag = 'scoped memory for tpu_custom_call.1']
    #allocation6 [shape = 's32[1]{0}', space=sflag, size = 0x4, scoped, tag = 'scoped memory for tpu_custom_call.1']
    #allocation7 [shape = 'u8[4096]{0}', space=vmem, size = 0x1000, scoped, tag = 'input window, operand 2, single buffered']
    #allocation8 [shape = 's32[1]{0}', space=sflag, size = 0x4, scoped, tag = 'scoped memory for tpu_custom_call.1']
    #allocation9 [shape = 'u8[8192]{0}', space=vmem, size = 0x2000, scoped, tag = 'output window, operand 0, single buffered']
    %12 = vsyncpa [#allocation5], 0
    %13 = vsyncpa [#allocation8], 0
    %14 = vsyncpa [#allocation6], 0
    // Predicated region
    $region2: #{tpu_custom_call.1} parent=1 // pred_check
      _
    $region3: #{tpu_custom_call.1} parent=1 // pred_check_branch
      %16 = sbr.rel (0) target = $region5
    $region4: #{tpu_custom_call.1} parent=1 // pred_region
      %s18 = ssub.s32 256, 256
      %19 = vsyncadd [#allocation5], %s18
      %s20 = sshll.u32 [#allocation4], 4
      %s21 = int_to_ptr.vmem [resolvable:$true] %s20
      %26 = dma.hbm_to_vmem [thread:$0]  %s1, 256, %s21, [#allocation5], 128, 128, 8
    $region5: #{tpu_custom_call.1} parent=1 // pred_fallthru
      _
    // Predicated region
    $region6: #{tpu_custom_call.1} parent=1 // pred_check
      _
    $region7: #{tpu_custom_call.1} parent=1 // pred_check_branch
      %28 = sbr.rel (0) target = $region9
    $region8: #{tpu_custom_call.1} parent=1 // pred_region
      %s30 = ssub.s32 128, 128
      %31 = vsyncadd [#allocation8], %s30
      %s32 = sshll.u32 [#allocation7], 4
      %s33 = int_to_ptr.vmem [resolvable:$true] %s32
      %38 = dma.hbm_to_vmem [thread:$0]  %s2, 128, %s33, [#allocation8], 64, 64, 4
    $region9: #{tpu_custom_call.1} parent=1 // pred_fallthru
      _
    // Predicated region
    $region10: #{tpu_custom_call.1} parent=1 // pred_check
      _
    $region11: #{tpu_custom_call.1} parent=1 // pred_check_branch
      %40 = sbr.rel (0) target = $region13
    $region12: #{tpu_custom_call.1} parent=1 // pred_region
      %41 = dma.done [#allocation5], 256
    $region13: #{tpu_custom_call.1} parent=1 // pred_fallthru
      _
    // Predicated region
    $region14: #{tpu_custom_call.1} parent=1 // pred_check
      _
    $region15: #{tpu_custom_call.1} parent=1 // pred_check_branch
      %43 = sbr.rel (0) target = $region17
    $region16: #{tpu_custom_call.1} parent=1 // pred_region
      %44 = dma.done [#allocation8], 128
    $region17: #{tpu_custom_call.1} parent=1 // pred_fallthru
      _
    %s45 = smul.u32 0, 2
    %p46 = scmp.lt.s32.totalorder %s45, 1
    %s47 = scalar_select %p46, %s45, 1
    %s48 = sld [smem:[#allocation3 + %s47]]
    %s49 = sshra.s32 %s48, 2
    %s50 = sand.u32 %s48, 3
    %s51 = sshra.s32 %s48, 2
    %s52 = sand.u32 %s48, 3
    %s53 = smul.u32 %s49, 2
    %s54 = smul.u32 %s53, 4
    %s55 = sadd.s32 %s54, %s52
    %s56 = scalar_lea.vmem [#allocation4], %s55
    %v57 = vld [vmem:[%s56] ss:$4 sm:$0x3]
    %v58 = vld [vmem:[#allocation7] ss:$2 sm:$0x3]
    %s59 = scalar_lea.vmem [#allocation7], 1
    %v60 = vld [vmem:[%s59] ss:$2 sm:$0x3]
    %v62 = vlaneseq
    %v63 = vshrl.u32 %v62, 7
    %v64 = vsub.s32 0, %v63
    %v65 = vrot.slane %v57, %v64
    %v66 = vlaneseq
    %v67 = vshrl.u32 %v66, 7
    %v68 = vsub.s32 1, %v67
    %v69 = vrot.slane %v57, %v68
    %vm72 = vcmask 1040384
    %v73 = vsel %vm72, %v65, -inf
    %v74 = vsel %vm72, %v69, -inf
    %v75 = vmax.f32 %v73, %v74
    %76 = vmax.xlane.f32.xlu0 %v75
    %v77 = vpop.xlane.xlu0 %76
    %v79 = vlaneseq
    %v80 = vshrl.u32 %v79, 7
    %v81 = vsub.s32 0, %v80
    %v82 = vrot.slane %v77, %v81
    %vm84 = vcmp.eq.f32.partialorder %v57, %v82
    %vm85 = vcmp.le.f32.partialorder %v58, 0.5
    %vm86 = vmand %vm84, %vm85
    %v87 = vsel %vm86, 1, 0
    %v88 = vcvt.s32.f32 %v87
    %v89 = vsub.f32 1.0, %v88
    %vm90 = vcmp.le.f32.partialorder %v60, 0.25
    %v91 = vsel %vm90, 1, 0
    %v92 = vcvt.s32.f32 %v91
    %v93 = vmul.f32 %v89, %v92
    %v94 = vadd.f32 %v88, %v93
    %v95 = vmul.f32 %v94, 0.9
    %v96 = vsub.f32 1.0, %v95
    %v97 = vld [vmem:[#allocation4] sm:$0xff]
    %v99 = vlaneseq
    %v100 = vshrl.u32 %v99, 7
    %v101 = vsub.s32 0, %v100
    %v102 = vrot.slane %v96, %v101
    %v103 = vlaneseq
    %v104 = vshrl.u32 %v103, 7
    %v105 = vsub.s32 1, %v104
    %v106 = vrot.slane %v96, %v105
    %v107 = vcombine.low %v102, %v106
    %v109 = vmul.f32 %v97, %v107
    %110 = vst [vmem:[#allocation9] sm:$0xff] %v109
    %s111 = sadd.s32 %s45, 1
    %p112 = scmp.lt.s32.totalorder %s111, 1
    %s113 = scalar_select %p112, %s111, 1
    %s114 = sld [smem:[#allocation3 + %s113]]
    %s115 = sshra.s32 %s114, 2
    %s116 = sand.u32 %s114, 3
    %s117 = sshra.s32 %s114, 2
    %s118 = sand.u32 %s114, 3
    %s119 = smul.u32 %s115, 2
    %s120 = smul.u32 %s119, 4
    %s121 = sadd.s32 %s120, %s118
    %s122 = sadd.s32 8, %s121
    %s123 = scalar_lea.vmem [#allocation4], %s122
    %v124 = vld [vmem:[%s123] ss:$4 sm:$0x3]
    %s125 = scalar_lea.vmem [#allocation7], 4
    %v126 = vld [vmem:[%s125] ss:$2 sm:$0x3]
    %s127 = scalar_lea.vmem %s125, 1 [#allocation7]
    %v128 = vld [vmem:[%s127] ss:$2 sm:$0x3]
    %v130 = vlaneseq
    %v131 = vshrl.u32 %v130, 7
    %v132 = vsub.s32 0, %v131
    %v133 = vrot.slane %v124, %v132
    %v134 = vlaneseq
    %v135 = vshrl.u32 %v134, 7
    %v136 = vsub.s32 1, %v135
    %v137 = vrot.slane %v124, %v136
    %v140 = vsel %vm72, %v133, -inf
    %v141 = vsel %vm72, %v137, -inf
    %v142 = vmax.f32 %v140, %v141
    %143 = vmax.xlane.f32.xlu0 %v142
    %v144 = vpop.xlane.xlu0 %143
    %v146 = vlaneseq
    %v147 = vshrl.u32 %v146, 7
    %v148 = vsub.s32 0, %v147
    %v149 = vrot.slane %v144, %v148
    %vm151 = vcmp.eq.f32.partialorder %v124, %v149
    %vm152 = vcmp.le.f32.partialorder %v126, 0.5
    %vm153 = vmand %vm151, %vm152
    %v154 = vsel %vm153, 1, 0
    %v155 = vcvt.s32.f32 %v154
    %v156 = vsub.f32 1.0, %v155
    %vm157 = vcmp.le.f32.partialorder %v128, 0.25
    %v158 = vsel %vm157, 1, 0
    %v159 = vcvt.s32.f32 %v158
    %v160 = vmul.f32 %v156, %v159
    %v161 = vadd.f32 %v155, %v160
    %v162 = vmul.f32 %v161, 0.9
    %v163 = vsub.f32 1.0, %v162
    %s164 = scalar_lea.vmem [#allocation4], 8
    %v165 = vld [vmem:[%s164] sm:$0xff]
    %v167 = vlaneseq
    %v168 = vshrl.u32 %v167, 7
    %v169 = vsub.s32 0, %v168
    %v170 = vrot.slane %v163, %v169
    %v171 = vlaneseq
    %v172 = vshrl.u32 %v171, 7
    %v173 = vsub.s32 1, %v172
    %v174 = vrot.slane %v163, %v173
    %v175 = vcombine.low %v170, %v174
    %v177 = vmul.f32 %v165, %v175
    %s178 = scalar_lea.vmem [#allocation9], 8
    %179 = vst [vmem:[%s178] sm:$0xff] %v177
    // Predicated region
    $region18: #{tpu_custom_call.1} parent=1 // pred_check
      _
    $region19: #{tpu_custom_call.1} parent=1 // pred_check_branch
      %181 = sbr.rel (0) target = $region21
    $region20: #{tpu_custom_call.1} parent=1 // pred_region
      %s183 = ssub.s32 256, 256
      %184 = vsyncadd [#allocation6], %s183
      %s185 = sshll.u32 [#allocation9], 4
      %s186 = int_to_ptr.vmem [resolvable:$true] %s185
      %191 = dma.vmem_to_hbm [thread:$0]  %s186, 256, %s3, [#allocation6], 128, 128, 8
    $region21: #{tpu_custom_call.1} parent=1 // pred_fallthru
      _
    // Predicated region
    $region22: #{tpu_custom_call.1} parent=1 // pred_check
      _
    $region23: #{tpu_custom_call.1} parent=1 // pred_check_branch
      %193 = sbr.rel (0) target = $region25
    $region24: #{tpu_custom_call.1} parent=1 // pred_region
      %194 = dma.done [#allocation6], 256
    $region25: #{tpu_custom_call.1} parent=1 // pred_fallthru
      _
    %195 = vsyncpa [#allocation5], 1
    %196 = vsyncpa [#allocation8], 1
    %197 = vsyncpa [#allocation6], 1

</llo_original>
